<compile_context>
chip_gen: v7x
topology: tpu7x:2x2x1
jax: 0.10.0
libtpu: 0.0.40
codegen_flags: <defaults>
</compile_context>

<pallas_src>
import jax
import jax.numpy as jnp
from jax.experimental import pallas as pl
from jax.experimental.pallas import tpu as pltpu

NEGATIVE_SLOPE = 0.01
IN_FEATURES = 3
OUT_FEATURES = 8

# 131072 f32 columns: x tile 1.5 MiB + out tile 4 MiB, double-buffered ~11 MiB
# -> safe under the default scoped-VMEM limit on v5e/v6e/v7x.
MAX_TB = 128 * 1024


def linear_leakyrelu_kernel(x_ref, w_ref, b_ref, o_ref):
    # x_ref: (3, TB)   batch on the lane axis (lane-dense)
    # w_ref: (8, 3)    weight, PyTorch (out_features, in_features) layout
    # b_ref: (8, 1)    bias column (broadcasts along lanes)
    # o_ref: (8, TB)   lane-dense output
    x = x_ref[...]
    w = w_ref[...]
    # Unrolled K=3 contraction as pure-VPU broadcast multiply-adds (no MXU):
    #   out[j, :] = b[j] + sum_k w[j, k] * x[k, :]
    acc = b_ref[...] + w[:, 0:1] * x[0:1, :]
    acc = acc + w[:, 1:2] * x[1:2, :]
    acc = acc + w[:, 2:3] * x[2:3, :]
    # leaky-ReLU
    o_ref[...] = jnp.where(acc > 0, acc, acc * NEGATIVE_SLOPE).astype(o_ref.dtype)


def _choose_tile(B, tb=None):
    """Pick a lane-multiple batch tile; big enough to amortize the ~0.35us
    per-grid-step overhead, small enough for scoped VMEM, and (for large B)
    leaving >= 2 grid steps so the parallel axis shards across v7x cores."""
    if tb is not None:
        tb = max(128, 128 * pl.cdiv(int(tb), 128))   # round up to lane multiple
        return min(tb, MAX_TB)
    tb = 128 * pl.cdiv(B, 128)
    if tb > 8 * 1024:
        # Large batch: split into at least 2 grid steps (pipelining + megacore).
        tb = 128 * pl.cdiv(pl.cdiv(B, 2), 128)
    return min(tb, MAX_TB)


def linear_leakyrelu_fb(xT, w, b, *, tb=None):
    """Zero-layout-round-trip entry point.

    xT: (3, B) f32, w: (8, 3) f32, b: (8,) f32  ->  (8, B) f32.
    """
    B = xT.shape[1]
    TB = _choose_tile(B, tb)
    grid = (pl.cdiv(B, TB),)
    b_col = b.reshape(OUT_FEATURES, 1)               # (8, 1) column bias

    # Memory-bound op: ~44 bytes and ~64 flops (incl. select) per batch element.
    cost = pl.CostEstimate(
        flops=(2 * IN_FEATURES + 2) * OUT_FEATURES * B,
        transcendentals=0,
        bytes_accessed=4 * (IN_FEATURES + OUT_FEATURES) * B
        + 4 * OUT_FEATURES * (IN_FEATURES + 1),
    )

    return pl.pallas_call(
        linear_leakyrelu_kernel,
        out_shape=jax.ShapeDtypeStruct((OUT_FEATURES, B), jnp.float32),
        grid=grid,
        in_specs=[
            pl.BlockSpec((IN_FEATURES, TB), lambda i: (0, i)),             # x tile
            pl.BlockSpec((OUT_FEATURES, IN_FEATURES), lambda i: (0, 0)),   # weight
            pl.BlockSpec((OUT_FEATURES, 1), lambda i: (0, 0)),             # bias
        ],
        out_specs=pl.BlockSpec((OUT_FEATURES, TB), lambda i: (0, i)),
        compiler_params=pltpu.CompilerParams(
            dimension_semantics=("parallel",)),
        cost_estimate=cost,
    )(xT, w, b_col)


def linear_leakyrelu(x, w, b, *, tb=None):
    """PyTorch-layout contract: x (B, 3) -> (B, 8)."""
    return linear_leakyrelu_fb(x.T, w, b, tb=tb).T


def _reference(x, w, b):
    v1 = x @ w.T + b
    return jnp.where(v1 > 0, v1, v1 * NEGATIVE_SLOPE)


if __name__ == "__main__":
    key = jax.random.PRNGKey(0)
    kx, kw, kb, kx2 = jax.random.split(key, 4)

    # Deterministic parameter init (mimicking nn.Linear's uniform init range).
    bound = 1.0 / (IN_FEATURES ** 0.5)
    w = jax.random.uniform(kw, (OUT_FEATURES, IN_FEATURES),
                           minval=-bound, maxval=bound, dtype=jnp.float32)
    b = jax.random.uniform(kb, (OUT_FEATURES,),
                           minval=-bound, maxval=bound, dtype=jnp.float32)

    # Small case (single grid step, ragged lane block B=8 < 128).
    B = 8
    x1 = jax.random.normal(kx, (B, IN_FEATURES), dtype=jnp.float32)
    out = jax.block_until_ready(linear_leakyrelu(x1, w, b))
    assert out.shape == (B, OUT_FEATURES)
    assert jnp.allclose(out, _reference(x1, w, b), atol=1e-5, rtol=1e-5)

    # Multi-step pipelined grid with a ragged final block (300 = 2*128 + 44),
    # exercising the user-supplied tile path (rounded/capped to 128 lanes).
    B2 = 300
    x2 = jax.random.normal(kx2, (B2, IN_FEATURES), dtype=jnp.float32)
    out2 = jax.block_until_ready(linear_leakyrelu(x2, w, b, tb=128))
    assert out2.shape == (B2, OUT_FEATURES)
    assert jnp.allclose(out2, _reference(x2, w, b), atol=1e-5, rtol=1e-5)

    # Transposed-layout (zero-round-trip) entry point, auto tile selection.
    out3 = jax.block_until_ready(linear_leakyrelu_fb(x2.T, w, b))
    assert out3.shape == (OUT_FEATURES, B2)
    assert jnp.allclose(out3.T, _reference(x2, w, b), atol=1e-5, rtol=1e-5)

    print("KERNEL_OK")
</pallas_src>

<mosaic_0001>
module attributes {stable_mosaic.version = 11 : i64} {
  func.func @linear_leakyrelu_kernel(%arg0: i32, %arg1: memref<3x128xf32, #tpu.memory_space<vmem>>, %arg2: memref<8x3xf32, #tpu.memory_space<vmem>>, %arg3: memref<8x1xf32, #tpu.memory_space<vmem>>, %arg4: memref<8x128xf32, #tpu.memory_space<vmem>>) attributes {dimension_semantics = [#tpu.dimension_semantics<parallel>], iteration_bounds = array<i64: 1>, scalar_prefetch = 0 : i64, scratch_operands = 0 : i64, tpu.core_type = #tpu.core_type<tc>, window_params = [{transform_indices = @transform_0, window_bounds = array<i64: 3, 128>}, {pipeline_mode = #tpu.pipeline_mode<synchronous>, transform_indices = @transform_1, window_bounds = array<i64: 8, 3>}, {pipeline_mode = #tpu.pipeline_mode<synchronous>, transform_indices = @transform_2, window_bounds = array<i64: 8, 1>}, {transform_indices = @transform_3, window_bounds = array<i64: 8, 128>}]} {
    %c0 = arith.constant 0 : index
    %c0_0 = arith.constant 0 : index
    %0 = vector.load %arg1[%c0, %c0_0] : memref<3x128xf32, #tpu.memory_space<vmem>>, vector<3x128xf32>
    %c0_1 = arith.constant 0 : index
    %c0_2 = arith.constant 0 : index
    %1 = vector.load %arg2[%c0_1, %c0_2] : memref<8x3xf32, #tpu.memory_space<vmem>>, vector<8x3xf32>
    %c0_3 = arith.constant 0 : index
    %c0_4 = arith.constant 0 : index
    %2 = vector.load %arg3[%c0_3, %c0_4] : memref<8x1xf32, #tpu.memory_space<vmem>>, vector<8x1xf32>
    %3 = vector.extract_strided_slice %1 {offsets = [0, 0], sizes = [8, 1], strides = [1, 1]} : vector<8x3xf32> to vector<8x1xf32>
    %4 = vector.extract_strided_slice %0 {offsets = [0, 0], sizes = [1, 128], strides = [1, 1]} : vector<3x128xf32> to vector<1x128xf32>
    %5 = vector.broadcast %3 : vector<8x1xf32> to vector<8x128xf32>
    %6 = vector.broadcast %4 : vector<1x128xf32> to vector<8x128xf32>
    %7 = arith.mulf %5, %6 : vector<8x128xf32>
    %8 = vector.broadcast %2 : vector<8x1xf32> to vector<8x128xf32>
    %9 = arith.addf %8, %7 : vector<8x128xf32>
    %10 = vector.extract_strided_slice %1 {offsets = [0, 1], sizes = [8, 1], strides = [1, 1]} : vector<8x3xf32> to vector<8x1xf32>
    %11 = vector.extract_strided_slice %0 {offsets = [1, 0], sizes = [1, 128], strides = [1, 1]} : vector<3x128xf32> to vector<1x128xf32>
    %12 = vector.broadcast %10 : vector<8x1xf32> to vector<8x128xf32>
    %13 = vector.broadcast %11 : vector<1x128xf32> to vector<8x128xf32>
    %14 = arith.mulf %12, %13 : vector<8x128xf32>
    %15 = arith.addf %9, %14 : vector<8x128xf32>
    %16 = vector.extract_strided_slice %1 {offsets = [0, 2], sizes = [8, 1], strides = [1, 1]} : vector<8x3xf32> to vector<8x1xf32>
    %17 = vector.extract_strided_slice %0 {offsets = [2, 0], sizes = [1, 128], strides = [1, 1]} : vector<3x128xf32> to vector<1x128xf32>
    %18 = vector.broadcast %16 : vector<8x1xf32> to vector<8x128xf32>
    %19 = vector.broadcast %17 : vector<1x128xf32> to vector<8x128xf32>
    %20 = arith.mulf %18, %19 : vector<8x128xf32>
    %21 = arith.addf %15, %20 : vector<8x128xf32>
    %cst = arith.constant 0.000000e+00 : f32
    %22 = vector.broadcast %cst : f32 to vector<8x128xf32>
    %23 = arith.cmpf ogt, %21, %22 : vector<8x128xf32>
    %cst_5 = arith.constant 0.00999999977 : f32
    %24 = vector.broadcast %cst_5 : f32 to vector<8x128xf32>
    %25 = arith.mulf %21, %24 : vector<8x128xf32>
    %26 = arith.select %23, %21, %25 : vector<8x128xi1>, vector<8x128xf32>
    %c0_6 = arith.constant 0 : index
    %c0_7 = arith.constant 0 : index
    %27 = vector.load %arg4[%c0_6, %c0_7] : memref<8x128xf32, #tpu.memory_space<vmem>>, vector<8x128xf32>
    tpu.vector_store %arg4[%c0_6, %c0_7], %26 {strides = array<i32>} : memref<8x128xf32, #tpu.memory_space<vmem>>, vector<8x128xf32>,
    return
  }
  func.func @transform_0(%arg0: i32) -> (i32, i32) {
    %c0_i32 = arith.constant 0 : i32
    %c0_i32_0 = arith.constant 0 : i32
    return %c0_i32, %arg0 : i32, i32
  }
  func.func @transform_1(%arg0: i32) -> (i32, i32) {
    %c0_i32 = arith.constant 0 : i32
    %c0_i32_0 = arith.constant 0 : i32
    %c0_i32_1 = arith.constant 0 : i32
    return %c0_i32, %c0_i32_0 : i32, i32
  }
  func.func @transform_2(%arg0: i32) -> (i32, i32) {
    %c0_i32 = arith.constant 0 : i32
    %c0_i32_0 = arith.constant 0 : i32
    %c0_i32_1 = arith.constant 0 : i32
    return %c0_i32, %c0_i32_0 : i32, i32
  }
  func.func @transform_3(%arg0: i32) -> (i32, i32) {
    %c0_i32 = arith.constant 0 : i32
    %c0_i32_0 = arith.constant 0 : i32
    return %c0_i32, %arg0 : i32, i32
  }
}

</mosaic_0001>

<llo_original>
// kernel: tpu_custom_call.1
$region0: #{tpu_custom_call.1}
  #allocation0 [shape = 'u32[]', space=smem, size = 0x4, offset = 0x4, fixed_abs, tag = 'smem constant byte address 0x4 - core index']
  #allocation1 [shape = 'u32[144,128]{1,0:T(1,128)}', space=vmem, size = 0x12000, scoped, tag = 'internal scratch']
  %s0 = inlined_call_operand.vmem [shape: f32[3,8], index: 0, kind: input, shape index: {}]
  %s1 = inlined_call_operand.vmem [shape: f32[8,3], index: 1, kind: input, shape index: {}]
  %s2 = inlined_call_operand.vmem [shape: f32[8,1], index: 2, kind: input, shape index: {}]
  %s3 = inlined_call_operand.hbm [shape: f32[8,8], index: 3, kind: output, shape index: {}]
  %s4 = sld [smem:[#allocation0]]
  $region22: #{tpu_custom_call.1} parent=0
    _
  %s6 = ssub.s32 1, %s4
  %s7 = scalar_select 0, %s6, %s4
  $region1: #{tpu_custom_call.1} parent=0
    #allocation2 [shape = 'u8[4096]{0}', space=vmem, size = 0x1000, scoped, tag = 'output window, operand 0, single buffered']
    #allocation3 [shape = 's32[1]{0}', space=sflag, size = 0x4, scoped, tag = 'scoped memory for tpu_custom_call.1']
    %8 = vsyncpa [#allocation3], 0
    // Predicated region
    $region2: #{tpu_custom_call.1} parent=1 // pred_check
      _
    $region3: #{tpu_custom_call.1} parent=1 // pred_check_branch
      %10 = sbr.rel (0) target = $region5
    $region4: #{tpu_custom_call.1} parent=1 // pred_region
      _
    $region5: #{tpu_custom_call.1} parent=1 // pred_fallthru
      _
    // Predicated region
    $region6: #{tpu_custom_call.1} parent=1 // pred_check
      _
    $region7: #{tpu_custom_call.1} parent=1 // pred_check_branch
      %12 = sbr.rel (0) target = $region9
    $region8: #{tpu_custom_call.1} parent=1 // pred_region
      _
    $region9: #{tpu_custom_call.1} parent=1 // pred_fallthru
      _
    // Predicated region
    $region10: #{tpu_custom_call.1} parent=1 // pred_check
      _
    $region11: #{tpu_custom_call.1} parent=1 // pred_check_branch
      %14 = sbr.rel (0) target = $region13
    $region12: #{tpu_custom_call.1} parent=1 // pred_region
      _
    $region13: #{tpu_custom_call.1} parent=1 // pred_fallthru
      _
    %v15 = vld [vmem:[%s0] sm:$0x7]
    %v16 = vld [vmem:[%s1] sm:$0xff]
    %v17 = vld [vmem:[%s2] sm:$0xff]
    %19 = vset.pattern.permute.xlu0 0
    %20 = vperm.xlu0 %19, %v16
    %v21 = vpop.permute.xlu0 %20
    %v23 = vlaneseq
    %v24 = vshrl.u32 %v23, 7
    %v25 = vsub.s32 0, %v24
    %v26 = vrot.slane %v15, %v25
    %v27 = vmul.f32 %v21, %v26
    %29 = vset.pattern.permute.xlu0 0
    %30 = vperm.xlu0 %29, %v17
    %v31 = vpop.permute.xlu0 %30
    %v33 = vadd.f32 %v31, %v27
    %34 = vset.pattern.permute.xlu0 1
    %35 = vperm.xlu0 %34, %v16
    %v36 = vpop.permute.xlu0 %35
    %v38 = vlaneseq
    %v39 = vshrl.u32 %v38, 7
    %v40 = vsub.s32 1, %v39
    %v41 = vrot.slane %v15, %v40
    %v42 = vmul.f32 %v36, %v41
    %v43 = vadd.f32 %v33, %v42
    %44 = vset.pattern.permute.xlu0 2
    %45 = vperm.xlu0 %44, %v16
    %v46 = vpop.permute.xlu0 %45
    %v48 = vlaneseq
    %v49 = vshrl.u32 %v48, 7
    %v50 = vsub.s32 2, %v49
    %v51 = vrot.slane %v15, %v50
    %v52 = vmul.f32 %v46, %v51
    %v53 = vadd.f32 %v43, %v52
    %vm54 = vcmp.gt.f32.partialorder %v53, 0.0
    %v55 = vmul.f32 %v53, 0.01
    %v56 = vsel %vm54, %v53, %v55
    %57 = vst [vmem:[#allocation2] sm:$0xff] %v56
    // Predicated region
    $region14: #{tpu_custom_call.1} parent=1 // pred_check
      _
    $region15: #{tpu_custom_call.1} parent=1 // pred_check_branch
      %59 = sbr.rel (0) target = $region17
    $region16: #{tpu_custom_call.1} parent=1 // pred_region
      %s61 = ssub.s32 128, 128
      %62 = vsyncadd [#allocation3], %s61
      %s64 = sshll.u32 [#allocation2], 4
      %s65 = int_to_ptr.vmem [resolvable:$true] %s64
      %67 = dma.vmem_to_hbm [thread:$0]  %s65, 128, %s3, [#allocation3]
    $region17: #{tpu_custom_call.1} parent=1 // pred_fallthru
      _
    // Predicated region
    $region18: #{tpu_custom_call.1} parent=1 // pred_check
      _
    $region19: #{tpu_custom_call.1} parent=1 // pred_check_branch
      %69 = sbr.rel (0) target = $region21
    $region20: #{tpu_custom_call.1} parent=1 // pred_region
      %70 = dma.done [#allocation3], 128
    $region21: #{tpu_custom_call.1} parent=1 // pred_fallthru
      _
    %71 = vsyncpa [#allocation3], 1

</llo_original>
